<compile_context>
chip_gen: v5e
topology: v5e:2x2
jax: 0.10.0
libtpu: 0.0.40
codegen_flags: <defaults>
</compile_context>

<pallas_src>
import jax
import jax.numpy as jnp
from jax.experimental import pallas as pl
from jax.experimental.pallas import tpu as pltpu

_LANES = 128                   # lane-dense last dim (bools are 1 byte each)
_TILE_ROWS = 16 * 1024         # 16384 * 128 B = 2 MiB per buffer per grid step
_MAX_SINGLE_BLOCK_ROWS = 256   # <= 32 KiB per buffer -> single block, no grid


def _and_kernel(a_ref, b_ref, o_ref):
    # Inputs are guaranteed bool by the wrapper.  One mask-AND per vreg;
    # logical_and(logical_and(a,b), logical_and(a,b)) == logical_and(a,b).
    o_ref[...] = jnp.logical_and(a_ref[...], b_ref[...])


def simple_and_module(a: jax.Array, b: jax.Array) -> jax.Array:
    """Pallas equivalent of SimpleAndModule.forward(a, b) -> bool array."""
    # torch.logical_and treats any nonzero as True and returns bool.
    if a.dtype != jnp.bool_:
        a = a != 0
    if b.dtype != jnp.bool_:
        b = b != 0
    # torch.logical_and broadcasts mismatched shapes.
    if a.shape != b.shape:
        bshape = jnp.broadcast_shapes(a.shape, b.shape)
        a = jnp.broadcast_to(a, bshape)
        b = jnp.broadcast_to(b, bshape)

    orig_shape = a.shape
    n = 1
    for d in orig_shape:
        n *= d
    if n == 0:
        return jnp.zeros(orig_shape, jnp.bool_)

    if n % _LANES == 0:
        rows = n // _LANES
        pad = 0
        a2 = a.reshape(rows, _LANES)
        b2 = b.reshape(rows, _LANES)
    else:
        # TODO(synk): rare fallback (numel not a multiple of 128) pads the flat
        # stream with False; this materializes copies but is off the hot path.
        rows = pl.cdiv(n, _LANES)
        pad = rows * _LANES - n
        a2 = jnp.pad(a.reshape(-1), (0, pad)).reshape(rows, _LANES)
        b2 = jnp.pad(b.reshape(-1), (0, pad)).reshape(rows, _LANES)

    out_shape = jax.ShapeDtypeStruct((rows, _LANES), jnp.bool_)

    if rows <= _MAX_SINGLE_BLOCK_ROWS:
        # Single whole-array block resident in VMEM: one DMA in per input,
        # one DMA out, one vector AND pass.
        out2 = pl.pallas_call(
            _and_kernel,
            out_shape=out_shape,
            in_specs=[
                pl.BlockSpec(memory_space=pltpu.MemorySpace.VMEM),
                pl.BlockSpec(memory_space=pltpu.MemorySpace.VMEM),
            ],
            out_specs=pl.BlockSpec(memory_space=pltpu.MemorySpace.VMEM),
        )(a2, b2)
    else:
        # Streaming path: 2 MiB lane-dense tiles, partial final block allowed
        # (OOB writes are dropped), parallel grid axis for megacore/v7x.
        grid = (pl.cdiv(rows, _TILE_ROWS),)
        out2 = pl.pallas_call(
            _and_kernel,
            out_shape=out_shape,
            grid=grid,
            in_specs=[
                pl.BlockSpec((_TILE_ROWS, _LANES), lambda i: (i, 0)),
                pl.BlockSpec((_TILE_ROWS, _LANES), lambda i: (i, 0)),
            ],
            out_specs=pl.BlockSpec((_TILE_ROWS, _LANES), lambda i: (i, 0)),
            compiler_params=pltpu.CompilerParams(
                dimension_semantics=("parallel",),
                vmem_limit_bytes=32 << 20,
            ),
        )(a2, b2)

    if pad:
        return out2.reshape(-1)[:n].reshape(orig_shape)
    return out2.reshape(orig_shape)


if __name__ == "__main__":
    key = jax.random.PRNGKey(0)
    ka, kb = jax.random.split(key)
    shape = (2, 4, 16, 16)

    # Deterministic boolean inputs.
    a = jax.random.uniform(ka, shape) > 0.5
    b = jax.random.uniform(kb, shape) > 0.5

    fn = jax.jit(simple_and_module)
    out = jax.block_until_ready(fn(a, b))

    # Reference check against plain JAX semantics of the torch module.
    c = jnp.logical_and(a, b)
    ref = jnp.logical_and(c, c)
    assert out.dtype == jnp.bool_
    assert out.shape == shape
    assert bool(jnp.all(out == ref))

    print("KERNEL_OK")
</pallas_src>

<mosaic_0001>
module attributes {stable_mosaic.version = 11 : i64} {
  func.func @_and_kernel(%arg0: memref<16x128xi32, #tpu.memory_space<vmem>>, %arg1: memref<16x128xi32, #tpu.memory_space<vmem>>, %arg2: memref<16x128xi32, #tpu.memory_space<vmem>>) attributes {dimension_semantics = [], scalar_prefetch = 0 : i64, scratch_operands = 0 : i64, tpu.core_type = #tpu.core_type<tc>} {
    %c0 = arith.constant 0 : index
    %c0_0 = arith.constant 0 : index
    %0 = vector.load %arg0[%c0, %c0_0] : memref<16x128xi32, #tpu.memory_space<vmem>>, vector<16x128xi32>
    %cst = arith.constant dense<0> : vector<16x128xi32>
    %1 = arith.cmpi ne, %0, %cst : vector<16x128xi32>
    %c0_1 = arith.constant 0 : index
    %c0_2 = arith.constant 0 : index
    %2 = vector.load %arg1[%c0_1, %c0_2] : memref<16x128xi32, #tpu.memory_space<vmem>>, vector<16x128xi32>
    %cst_3 = arith.constant dense<0> : vector<16x128xi32>
    %3 = arith.cmpi ne, %2, %cst_3 : vector<16x128xi32>
    %4 = arith.andi %1, %3 : vector<16x128xi1>
    %c0_4 = arith.constant 0 : index
    %c0_5 = arith.constant 0 : index
    %5 = vector.load %arg2[%c0_4, %c0_5] : memref<16x128xi32, #tpu.memory_space<vmem>>, vector<16x128xi32>
    %6 = arith.extui %4 : vector<16x128xi1> to vector<16x128xi32>
    %cst_6 = arith.constant dense<0> : vector<16x128xi32>
    %7 = arith.cmpi ne, %5, %cst_6 : vector<16x128xi32>
    tpu.vector_store %arg2[%c0_4, %c0_5], %6 {strides = array<i32>} : memref<16x128xi32, #tpu.memory_space<vmem>>, vector<16x128xi32>,
    return
  }
}

</mosaic_0001>

<llo_original>
// kernel: simple_and_module.1
$region0: #{simple_and_module.1}
  #allocation0 [shape = 'u32[]', space=smem, size = 0x4, offset = 0x4, fixed_abs, tag = 'smem constant byte address 0x4 - core index']
  #allocation1 [shape = 'u32[72,128]{1,0:T(1,128)}', space=vmem, size = 0x9000, scoped, tag = 'internal scratch']
  %s0 = inlined_call_operand.vmem [shape: s32[16,128], index: 0, kind: input, shape index: {}]
  %s1 = inlined_call_operand.vmem [shape: s32[16,128], index: 1, kind: input, shape index: {}]
  %s2 = inlined_call_operand.vmem [shape: s32[16,128], index: 2, kind: output, shape index: {}]
  %s3 = sld [smem:[#allocation0]]
  $region18: #{simple_and_module.1} parent=0
    _
  %s5 = ssub.s32 1, %s3
  %s6 = scalar_select 0, %s5, %s3
  // Predicated region
  $region2: #{simple_and_module.1} parent=0 // pred_check
    _
  $region3: #{simple_and_module.1} parent=0 // pred_check_branch
    %8 = sbr.rel (0) target = $region5
  $region4: #{simple_and_module.1} parent=0 // pred_region
    _
  $region5: #{simple_and_module.1} parent=0 // pred_fallthru
    _
  // Predicated region
  $region6: #{simple_and_module.1} parent=0 // pred_check
    _
  $region7: #{simple_and_module.1} parent=0 // pred_check_branch
    %10 = sbr.rel (0) target = $region9
  $region8: #{simple_and_module.1} parent=0 // pred_region
    _
  $region9: #{simple_and_module.1} parent=0 // pred_fallthru
    _
  %v11 = vld [vmem:[%s0] sm:$0xff]
  %v12 = vld [vmem:[%s0 + $0x8] sm:$0xff]
  %vm13 = vcmp.ne.s32.totalorder %v11, 0
  %vm14 = vcmp.ne.s32.totalorder %v12, 0
  %v15 = vld [vmem:[%s1] sm:$0xff]
  %v16 = vld [vmem:[%s1 + $0x8] sm:$0xff]
  %vm17 = vcmp.ne.s32.totalorder %v15, 0
  %vm18 = vcmp.ne.s32.totalorder %v16, 0
  %vm19 = vmand %vm13, %vm17
  %vm20 = vmand %vm14, %vm18
  %v21 = vsel %vm19, 1, 0
  %v22 = vsel %vm20, 1, 0
  %23 = vst [vmem:[%s2] sm:$0xff] %v21
  %24 = vst [vmem:[%s2 + $0x8] sm:$0xff] %v22
  // Predicated region
  $region10: #{simple_and_module.1} parent=0 // pred_check
    _
  $region11: #{simple_and_module.1} parent=0 // pred_check_branch
    %26 = sbr.rel (0) target = $region13
  $region12: #{simple_and_module.1} parent=0 // pred_region
    _
  $region13: #{simple_and_module.1} parent=0 // pred_fallthru
    _
  // Predicated region
  $region14: #{simple_and_module.1} parent=0 // pred_check
    _
  $region15: #{simple_and_module.1} parent=0 // pred_check_branch
    %28 = sbr.rel (0) target = $region17
  $region16: #{simple_and_module.1} parent=0 // pred_region
    _
  $region17: #{simple_and_module.1} parent=0 // pred_fallthru
    _

</llo_original>
